<compile_context>
chip_gen: v7x
topology: tpu7x:2x2x1
jax: 0.10.0
libtpu: 0.0.40
codegen_flags: <defaults>
</compile_context>

<pallas_src>
import functools

import jax
import jax.numpy as jnp
from jax.experimental import pallas as pl
from jax.experimental.pallas import tpu as pltpu


# ----------------------------------------------------------------------------
# helpers
# ----------------------------------------------------------------------------

def _round_up(n, m):
    return (n + m - 1) // m * m


def _pick_tile(n, target):
    """Pick a sublane-friendly (multiple-of-8) tile and the padded extent."""
    if n >= target:
        tile = target                      # target is a multiple of 8
    else:
        tile = _round_up(max(n, 1), 8)
    return tile, _round_up(n, tile)


# ----------------------------------------------------------------------------
# Pallas kernels
# ----------------------------------------------------------------------------

def _hypernet_kernel(code_ref, wmat_ref, woff_ref, amat_ref, aoff_ref,
                     weff_ref, beff_ref):
    """Per-group effective weight / bias:
         weff = code @ Wmat + Woff      (Wmat: (J, I*O) from W; Woff: flattened B)
         beff = code @ Amat + Aoff      (Amat: A^T;            Aoff: bias)
    """
    c = code_ref[...]
    weff_ref[...] = (jnp.dot(c, wmat_ref[...],
                             preferred_element_type=jnp.float32)
                     + woff_ref[...]).astype(weff_ref.dtype)
    beff_ref[...] = (jnp.dot(c, amat_ref[...],
                             preferred_element_type=jnp.float32)
                     + aoff_ref[...]).astype(beff_ref.dtype)


def _bilinear_apply_kernel(x_ref, w_ref, b_ref, o_ref):
    """out_tile = x_tile @ Meff[g] + beff[g]   (single fused matmul + bias)."""
    # x: (1, TM, I)   w: (1, I, O)   b: (1, 1, O)   o: (1, TM, O)
    o_ref[0] = (jnp.dot(x_ref[0], w_ref[0],
                        preferred_element_type=jnp.float32)
                + b_ref[0]).astype(o_ref.dtype)


# ----------------------------------------------------------------------------
# Forward pass
# ----------------------------------------------------------------------------

def generalized_bilinear_forward(params, input1, input2, mode="1111"):
    """input1: (B, T, H, W, S, in1)   input2: (B, T, S, in2)
       params: dict with (optionally None) 'W' (O,I,J), 'A' (O,J), 'B' (O,I), 'bias' (O,)
       returns: (B, T, H, W, S, O) float32
    """
    Bn, T, H, W, S, I = input1.shape
    Bc, Tc, Sc, J = input2.shape
    assert (Bn, T, S) == (Bc, Tc, Sc), "input1/input2 batch dims mismatch"
    assert len(mode) == 4 and all(c in "01" for c in mode)

    W_, A_, Bm, bias = (params.get("W"), params.get("A"),
                        params.get("B"), params.get("bias"))
    if mode[0] == "1":
        O = W_.shape[0]
    elif mode[1] == "1":
        O = A_.shape[0]
    elif mode[2] == "1":
        O = Bm.shape[0]
    else:
        O = bias.shape[0]   # TODO(synk): mode '0000' with no params cannot infer O.

    dt = jnp.float32
    IO = I * O

    # --- fold all four terms into one per-group (weight, bias) pair ----------
    # Disabled terms become zero operands (tiny hypernet matmul, semantics exact).
    wmat = (jnp.transpose(W_, (2, 1, 0)).reshape(J, IO).astype(dt)
            if mode[0] == "1" else jnp.zeros((J, IO), dt))
    woff = (jnp.transpose(Bm, (1, 0)).reshape(1, IO).astype(dt)
            if mode[2] == "1" else jnp.zeros((1, IO), dt))
    amat = (jnp.transpose(A_, (1, 0)).astype(dt)
            if mode[1] == "1" else jnp.zeros((J, O), dt))
    aoff = (bias.reshape(1, O).astype(dt)
            if mode[3] == "1" else jnp.zeros((1, O), dt))

    G = Bn * T * S
    code = input2.reshape(G, J).astype(dt)
    TG, Gp = _pick_tile(G, 256)
    if Gp != G:
        code = jnp.pad(code, ((0, Gp - G), (0, 0)))

    weff, beff = pl.pallas_call(
        _hypernet_kernel,
        out_shape=(jax.ShapeDtypeStruct((Gp, IO), dt),
                   jax.ShapeDtypeStruct((Gp, O), dt)),
        grid_spec=pltpu.PrefetchScalarGridSpec(
            num_scalar_prefetch=0,
            grid=(Gp // TG,),
            in_specs=[
                pl.BlockSpec((TG, J), lambda g: (g, 0)),
                pl.BlockSpec((J, IO), lambda g: (0, 0)),
                pl.BlockSpec((1, IO), lambda g: (0, 0)),
                pl.BlockSpec((J, O), lambda g: (0, 0)),
                pl.BlockSpec((1, O), lambda g: (0, 0)),
            ],
            out_specs=[
                pl.BlockSpec((TG, IO), lambda g: (g, 0)),
                pl.BlockSpec((TG, O), lambda g: (g, 0)),
            ],
        ),
        compiler_params=pltpu.CompilerParams(
            dimension_semantics=("parallel",)),
    )(code, wmat, woff, amat, aoff)

    meff = weff[:G].reshape(G, I, O)      # per-group effective weight (I, O)
    beff = beff[:G].reshape(G, 1, O)      # per-group effective bias   (1, O)

    # --- heavy path: per-group tiled matmul over the spatial axis ------------
    M = H * W
    # group layout (b,t,s) on the leading axis so each group is one dense matmul;
    # this transpose is plain-JAX layout plumbing (free when S == 1).
    x1g = jnp.transpose(input1, (0, 1, 4, 2, 3, 5)).reshape(G, M, I).astype(dt)
    TM, Mp = _pick_tile(M, 1024)
    if Mp != M:
        x1g = jnp.pad(x1g, ((0, 0), (0, Mp - M), (0, 0)))

    out = pl.pallas_call(
        _bilinear_apply_kernel,
        out_shape=jax.ShapeDtypeStruct((G, Mp, O), dt),
        grid_spec=pltpu.PrefetchScalarGridSpec(
            num_scalar_prefetch=0,
            grid=(G, Mp // TM),
            in_specs=[
                pl.BlockSpec((1, TM, I), lambda g, m: (g, m, 0)),
                pl.BlockSpec((1, I, O), lambda g, m: (g, 0, 0)),
                pl.BlockSpec((1, 1, O), lambda g, m: (g, 0, 0)),
            ],
            out_specs=pl.BlockSpec((1, TM, O), lambda g, m: (g, m, 0)),
        ),
        compiler_params=pltpu.CompilerParams(
            dimension_semantics=("parallel", "parallel")),
    )(x1g, meff, beff)

    out = out[:, :M, :].reshape(Bn, T, S, H, W, O)
    return jnp.transpose(out, (0, 1, 3, 4, 2, 5))   # -> (B, T, H, W, S, O)


# ----------------------------------------------------------------------------
# Example / self-check
# ----------------------------------------------------------------------------

if __name__ == "__main__":
    key = jax.random.PRNGKey(0)
    kW, kA, kB, kb, k1, k2 = jax.random.split(key, 6)

    Bn, T, H, W_, S = 2, 2, 8, 8, 2
    in1, in2, out_f = 3, 16, 128          # lane-dense out_features (multiple of 128)
    mode = "1111"

    bound = 1.0 / (in1 ** 0.5)
    params = dict(
        W=jax.random.uniform(kW, (out_f, in1, in2), jnp.float32, -bound, bound),
        A=jax.random.uniform(kA, (out_f, in2), jnp.float32, -bound, bound),
        B=jax.random.uniform(kB, (out_f, in1), jnp.float32, -bound, bound),
        bias=jax.random.uniform(kb, (out_f,), jnp.float32, -bound, bound),
    )
    input1 = jax.random.normal(k1, (Bn, T, H, W_, S, in1), jnp.float32)
    input2 = jax.random.normal(k2, (Bn, T, S, in2), jnp.float32)

    fwd = jax.jit(functools.partial(generalized_bilinear_forward, mode=mode))
    y = fwd(params, input1, input2)
    jax.block_until_ready(y)

    # pure-JAX reference (mirrors the PyTorch forward)
    wc = jnp.einsum('btsj,oij->btsoi', input2, params['W'])
    ref = jnp.einsum('bthwsi,btsoi->bthwso', input1, wc)
    ref = ref + jnp.einsum('bthwsi,oi->bthwso', input1, params['B'])
    bc = jnp.einsum('btsj,oj->btso', input2, params['A'])
    ref = ref + bc[:, :, None, None, :, :]
    ref = ref + params['bias']

    assert y.shape == (Bn, T, H, W_, S, out_f), y.shape
    assert bool(jnp.all(jnp.isfinite(y)))
    assert bool(jnp.allclose(y, ref, atol=3e-2, rtol=3e-2)), \
        float(jnp.max(jnp.abs(y - ref)))
    print("KERNEL_OK")
</pallas_src>

<mosaic_0001>
module attributes {stable_mosaic.version = 11 : i64} {
  func.func @_hypernet_kernel(%arg0: i32, %arg1: memref<8x16xf32, #tpu.memory_space<vmem>>, %arg2: memref<16x384xf32, #tpu.memory_space<vmem>>, %arg3: memref<1x384xf32, #tpu.memory_space<vmem>>, %arg4: memref<16x128xf32, #tpu.memory_space<vmem>>, %arg5: memref<1x128xf32, #tpu.memory_space<vmem>>, %arg6: memref<8x384xf32, #tpu.memory_space<vmem>>, %arg7: memref<8x128xf32, #tpu.memory_space<vmem>>) attributes {dimension_semantics = [#tpu.dimension_semantics<parallel>], iteration_bounds = array<i64: 1>, scalar_prefetch = 0 : i64, scratch_operands = 0 : i64, tpu.core_type = #tpu.core_type<tc>, window_params = [{transform_indices = @transform_0, window_bounds = array<i64: 8, 16>}, {pipeline_mode = #tpu.pipeline_mode<synchronous>, transform_indices = @transform_1, window_bounds = array<i64: 16, 384>}, {pipeline_mode = #tpu.pipeline_mode<synchronous>, transform_indices = @transform_2, window_bounds = array<i64: 1, 384>}, {pipeline_mode = #tpu.pipeline_mode<synchronous>, transform_indices = @transform_3, window_bounds = array<i64: 16, 128>}, {pipeline_mode = #tpu.pipeline_mode<synchronous>, transform_indices = @transform_4, window_bounds = array<i64: 1, 128>}, {transform_indices = @transform_5, window_bounds = array<i64: 8, 384>}, {transform_indices = @transform_6, window_bounds = array<i64: 8, 128>}]} {
    %c0 = arith.constant 0 : index
    %c0_0 = arith.constant 0 : index
    %0 = vector.load %arg1[%c0, %c0_0] : memref<8x16xf32, #tpu.memory_space<vmem>>, vector<8x16xf32>
    %c0_1 = arith.constant 0 : index
    %c0_2 = arith.constant 0 : index
    %1 = vector.load %arg2[%c0_1, %c0_2] : memref<16x384xf32, #tpu.memory_space<vmem>>, vector<16x384xf32>
    %cst = arith.constant dense<0.000000e+00> : vector<8x384xf32>
    %2 = tpu.matmul %0, %1, %cst {dimension_numbers = #tpu.dot_dimension_numbers<[1], [0], [0], [1], [0, 0, 1, 1], [], []>} : vector<8x16xf32>, vector<16x384xf32>, vector<8x384xf32> -> vector<8x384xf32>
    %c0_3 = arith.constant 0 : index
    %c0_4 = arith.constant 0 : index
    %3 = vector.load %arg3[%c0_3, %c0_4] : memref<1x384xf32, #tpu.memory_space<vmem>>, vector<1x384xf32>
    %4 = vector.broadcast %3 : vector<1x384xf32> to vector<8x384xf32>
    %5 = arith.addf %2, %4 : vector<8x384xf32>
    %c0_5 = arith.constant 0 : index
    %c0_6 = arith.constant 0 : index
    %6 = vector.load %arg6[%c0_5, %c0_6] : memref<8x384xf32, #tpu.memory_space<vmem>>, vector<8x384xf32>
    tpu.vector_store %arg6[%c0_5, %c0_6], %5 {strides = array<i32>} : memref<8x384xf32, #tpu.memory_space<vmem>>, vector<8x384xf32>,
    %c0_7 = arith.constant 0 : index
    %c0_8 = arith.constant 0 : index
    %7 = vector.load %arg4[%c0_7, %c0_8] : memref<16x128xf32, #tpu.memory_space<vmem>>, vector<16x128xf32>
    %cst_9 = arith.constant dense<0.000000e+00> : vector<8x128xf32>
    %8 = tpu.matmul %0, %7, %cst_9 {dimension_numbers = #tpu.dot_dimension_numbers<[1], [0], [0], [1], [0, 0, 1, 1], [], []>} : vector<8x16xf32>, vector<16x128xf32>, vector<8x128xf32> -> vector<8x128xf32>
    %c0_10 = arith.constant 0 : index
    %c0_11 = arith.constant 0 : index
    %9 = vector.load %arg5[%c0_10, %c0_11] : memref<1x128xf32, #tpu.memory_space<vmem>>, vector<1x128xf32>
    %10 = vector.broadcast %9 : vector<1x128xf32> to vector<8x128xf32>
    %11 = arith.addf %8, %10 : vector<8x128xf32>
    %c0_12 = arith.constant 0 : index
    %c0_13 = arith.constant 0 : index
    %12 = vector.load %arg7[%c0_12, %c0_13] : memref<8x128xf32, #tpu.memory_space<vmem>>, vector<8x128xf32>
    tpu.vector_store %arg7[%c0_12, %c0_13], %11 {strides = array<i32>} : memref<8x128xf32, #tpu.memory_space<vmem>>, vector<8x128xf32>,
    return
  }
  func.func @transform_0(%arg0: i32) -> (i32, i32) {
    %c0_i32 = arith.constant 0 : i32
    %c0_i32_0 = arith.constant 0 : i32
    return %arg0, %c0_i32 : i32, i32
  }
  func.func @transform_1(%arg0: i32) -> (i32, i32) {
    %c0_i32 = arith.constant 0 : i32
    %c0_i32_0 = arith.constant 0 : i32
    %c0_i32_1 = arith.constant 0 : i32
    return %c0_i32, %c0_i32_0 : i32, i32
  }
  func.func @transform_2(%arg0: i32) -> (i32, i32) {
    %c0_i32 = arith.constant 0 : i32
    %c0_i32_0 = arith.constant 0 : i32
    %c0_i32_1 = arith.constant 0 : i32
    return %c0_i32, %c0_i32_0 : i32, i32
  }
  func.func @transform_3(%arg0: i32) -> (i32, i32) {
    %c0_i32 = arith.constant 0 : i32
    %c0_i32_0 = arith.constant 0 : i32
    %c0_i32_1 = arith.constant 0 : i32
    return %c0_i32, %c0_i32_0 : i32, i32
  }
  func.func @transform_4(%arg0: i32) -> (i32, i32) {
    %c0_i32 = arith.constant 0 : i32
    %c0_i32_0 = arith.constant 0 : i32
    %c0_i32_1 = arith.constant 0 : i32
    return %c0_i32, %c0_i32_0 : i32, i32
  }
  func.func @transform_5(%arg0: i32) -> (i32, i32) {
    %c0_i32 = arith.constant 0 : i32
    %c0_i32_0 = arith.constant 0 : i32
    return %arg0, %c0_i32 : i32, i32
  }
  func.func @transform_6(%arg0: i32) -> (i32, i32) {
    %c0_i32 = arith.constant 0 : i32
    %c0_i32_0 = arith.constant 0 : i32
    return %arg0, %c0_i32 : i32, i32
  }
}

module attributes {stable_mosaic.version = 11 : i64} {
  func.func @_bilinear_apply_kernel(%arg0: i32, %arg1: i32, %arg2: memref<1x64x3xf32, #tpu.memory_space<vmem>>, %arg3: memref<1x3x128xf32, #tpu.memory_space<vmem>>, %arg4: memref<1x1x128xf32, #tpu.memory_space<vmem>>, %arg5: memref<1x64x128xf32, #tpu.memory_space<vmem>>) attributes {dimension_semantics = [#tpu.dimension_semantics<parallel>, #tpu.dimension_semantics<parallel>], iteration_bounds = array<i64: 8, 1>, scalar_prefetch = 0 : i64, scratch_operands = 0 : i64, tpu.core_type = #tpu.core_type<tc>, window_params = [{transform_indices = @transform_0, window_bounds = array<i64: 1, 64, 3>}, {transform_indices = @transform_1, window_bounds = array<i64: 1, 3, 128>}, {transform_indices = @transform_2, window_bounds = array<i64: 1, 1, 128>}, {transform_indices = @transform_3, window_bounds = array<i64: 1, 64, 128>}]} {
    %c0 = arith.constant 0 : index
    %c0_0 = arith.constant 0 : index
    %c0_1 = arith.constant 0 : index
    %0 = vector.load %arg2[%c0, %c0_0, %c0_1] : memref<1x64x3xf32, #tpu.memory_space<vmem>>, vector<1x64x3xf32>
    %1 = vector.shape_cast %0 : vector<1x64x3xf32> to vector<64x3xf32>
    %c0_2 = arith.constant 0 : index
    %c0_3 = arith.constant 0 : index
    %c0_4 = arith.constant 0 : index
    %2 = vector.load %arg3[%c0_2, %c0_3, %c0_4] : memref<1x3x128xf32, #tpu.memory_space<vmem>>, vector<1x3x128xf32>
    %3 = vector.shape_cast %2 : vector<1x3x128xf32> to vector<3x128xf32>
    %cst = arith.constant dense<0.000000e+00> : vector<64x128xf32>
    %4 = tpu.matmul %1, %3, %cst {dimension_numbers = #tpu.dot_dimension_numbers<[1], [0], [0], [1], [0, 0, 1, 1], [], []>} : vector<64x3xf32>, vector<3x128xf32>, vector<64x128xf32> -> vector<64x128xf32>
    %c0_5 = arith.constant 0 : index
    %c0_6 = arith.constant 0 : index
    %c0_7 = arith.constant 0 : index
    %5 = vector.load %arg4[%c0_5, %c0_6, %c0_7] : memref<1x1x128xf32, #tpu.memory_space<vmem>>, vector<1x1x128xf32>
    %6 = vector.shape_cast %5 : vector<1x1x128xf32> to vector<1x128xf32>
    %7 = vector.broadcast %6 : vector<1x128xf32> to vector<64x128xf32>
    %8 = arith.addf %4, %7 : vector<64x128xf32>
    %c0_8 = arith.constant 0 : index
    %c0_9 = arith.constant 0 : index
    %c0_10 = arith.constant 0 : index
    %9 = vector.load %arg5[%c0_8, %c0_9, %c0_10] : memref<1x64x128xf32, #tpu.memory_space<vmem>>, vector<1x64x128xf32>
    %10 = vector.shape_cast %9 : vector<1x64x128xf32> to vector<64x128xf32>
    %11 = vector.shape_cast %8 : vector<64x128xf32> to vector<1x64x128xf32>
    tpu.vector_store %arg5[%c0_8, %c0_9, %c0_10], %11 {strides = array<i32>} : memref<1x64x128xf32, #tpu.memory_space<vmem>>, vector<1x64x128xf32>,
    return
  }
  func.func @transform_0(%arg0: i32, %arg1: i32) -> (i32, i32, i32) {
    %c0_i32 = arith.constant 0 : i32
    %c0_i32_0 = arith.constant 0 : i32
    return %arg0, %arg1, %c0_i32 : i32, i32, i32
  }
  func.func @transform_1(%arg0: i32, %arg1: i32) -> (i32, i32, i32) {
    %c0_i32 = arith.constant 0 : i32
    %c0_i32_0 = arith.constant 0 : i32
    %c0_i32_1 = arith.constant 0 : i32
    return %arg0, %c0_i32, %c0_i32_0 : i32, i32, i32
  }
  func.func @transform_2(%arg0: i32, %arg1: i32) -> (i32, i32, i32) {
    %c0_i32 = arith.constant 0 : i32
    %c0_i32_0 = arith.constant 0 : i32
    %c0_i32_1 = arith.constant 0 : i32
    return %arg0, %c0_i32, %c0_i32_0 : i32, i32, i32
  }
  func.func @transform_3(%arg0: i32, %arg1: i32) -> (i32, i32, i32) {
    %c0_i32 = arith.constant 0 : i32
    %c0_i32_0 = arith.constant 0 : i32
    return %arg0, %arg1, %c0_i32 : i32, i32, i32
  }
}

</mosaic_0001>

<llo_original>
// kernel: generalized_bilinear_forward.2
$region0: #{generalized_bilinear_forward.2}
  #allocation0 [shape = 'u32[]', space=smem, size = 0x4, offset = 0x4, fixed_abs, tag = 'smem constant byte address 0x4 - core index']
  #allocation1 [shape = 'u32[144,128]{1,0:T(1,128)}', space=vmem, size = 0x12000, scoped, tag = 'internal scratch']
  %s0 = inlined_call_operand.vmem [shape: f32[8,16], index: 0, kind: input, shape index: {}]
  %s1 = inlined_call_operand.vmem [shape: f32[16,384], index: 1, kind: input, shape index: {}]
  %s2 = inlined_call_operand.vmem [shape: f32[1,384], index: 2, kind: input, shape index: {}]
  %s3 = inlined_call_operand.hbm [shape: f32[16,128], index: 3, kind: input, shape index: {}]
  %s4 = inlined_call_operand.hbm [shape: f32[1,128], index: 4, kind: input, shape index: {}]
  %s5 = inlined_call_operand.vmem [shape: f32[8,384], index: 5, kind: output, shape index: {0}]
  %s6 = inlined_call_operand.vmem [shape: f32[8,128], index: 6, kind: output, shape index: {1}]
  %7 = xla_tuple %s5, %s6
  %s8 = sld [smem:[#allocation0]]
  $region46: #{generalized_bilinear_forward.2} parent=0
    _
  %s10 = ssub.s32 1, %s8
  %s11 = scalar_select 0, %s10, %s8
  $region1: #{generalized_bilinear_forward.2} parent=0
    #allocation2 [shape = 'u8[8192]{0}', space=vmem, size = 0x2000, scoped, tag = 'input window, operand 3, single buffered']
    #allocation3 [shape = 's32[1]{0}', space=sflag, size = 0x4, scoped, tag = 'scoped memory for generalized_bilinear_forward.2']
    #allocation4 [shape = 'u8[512]{0}', space=vmem, size = 0x400, scoped, tag = 'input window, operand 4, single buffered']
    #allocation5 [shape = 's32[1]{0}', space=sflag, size = 0x4, scoped, tag = 'scoped memory for generalized_bilinear_forward.2']
    %12 = vsyncpa [#allocation3], 0
    %13 = vsyncpa [#allocation5], 0
    // Predicated region
    $region2: #{generalized_bilinear_forward.2} parent=1 // pred_check
      _
    $region3: #{generalized_bilinear_forward.2} parent=1 // pred_check_branch
      %15 = sbr.rel (0) target = $region5
    $region4: #{generalized_bilinear_forward.2} parent=1 // pred_region
      _
    $region5: #{generalized_bilinear_forward.2} parent=1 // pred_fallthru
      _
    // Predicated region
    $region6: #{generalized_bilinear_forward.2} parent=1 // pred_check
      _
    $region7: #{generalized_bilinear_forward.2} parent=1 // pred_check_branch
      %17 = sbr.rel (0) target = $region9
    $region8: #{generalized_bilinear_forward.2} parent=1 // pred_region
      _
    $region9: #{generalized_bilinear_forward.2} parent=1 // pred_fallthru
      _
    // Predicated region
    $region10: #{generalized_bilinear_forward.2} parent=1 // pred_check
      _
    $region11: #{generalized_bilinear_forward.2} parent=1 // pred_check_branch
      %19 = sbr.rel (0) target = $region13
    $region12: #{generalized_bilinear_forward.2} parent=1 // pred_region
      _
    $region13: #{generalized_bilinear_forward.2} parent=1 // pred_fallthru
      _
    // Predicated region
    $region14: #{generalized_bilinear_forward.2} parent=1 // pred_check
      _
    $region15: #{generalized_bilinear_forward.2} parent=1 // pred_check_branch
      %21 = sbr.rel (0) target = $region17
    $region16: #{generalized_bilinear_forward.2} parent=1 // pred_region
      %s23 = ssub.s32 256, 256
      %24 = vsyncadd [#allocation3], %s23
      %s25 = sshll.u32 [#allocation2], 4
      %s26 = int_to_ptr.vmem [resolvable:$true] %s25
      %31 = dma.hbm_to_vmem [thread:$0]  %s3, 256, %s26, [#allocation3], 128, 128, 8
    $region17: #{generalized_bilinear_forward.2} parent=1 // pred_fallthru
      _
    // Predicated region
    $region18: #{generalized_bilinear_forward.2} parent=1 // pred_check
      _
    $region19: #{generalized_bilinear_forward.2} parent=1 // pred_check_branch
      %33 = sbr.rel (0) target = $region21
    $region20: #{generalized_bilinear_forward.2} parent=1 // pred_region
      %s35 = ssub.s32 16, 16
      %36 = vsyncadd [#allocation5], %s35
      %s38 = sshll.u32 [#allocation4], 4
      %s39 = int_to_ptr.vmem [resolvable:$true] %s38
      %41 = dma.hbm_to_vmem [thread:$0]  %s4, 16, %s39, [#allocation5]
    $region21: #{generalized_bilinear_forward.2} parent=1 // pred_fallthru
      _
    // Predicated region
    $region22: #{generalized_bilinear_forward.2} parent=1 // pred_check
      _
    $region23: #{generalized_bilinear_forward.2} parent=1 // pred_check_branch
      %43 = sbr.rel (0) target = $region25
    $region24: #{generalized_bilinear_forward.2} parent=1 // pred_region
      %44 = dma.done [#allocation3], 256
    $region25: #{generalized_bilinear_forward.2} parent=1 // pred_fallthru
      _
    // Predicated region
    $region26: #{generalized_bilinear_forward.2} parent=1 // pred_check
      _
    $region27: #{generalized_bilinear_forward.2} parent=1 // pred_check_branch
      %46 = sbr.rel (0) target = $region29
    $region28: #{generalized_bilinear_forward.2} parent=1 // pred_region
      %47 = dma.done [#allocation5], 16
    $region29: #{generalized_bilinear_forward.2} parent=1 // pred_fallthru
      _
    %v48 = vld [vmem:[%s0] sm:$0xff]
    %v49 = vld [vmem:[%s1] sm:$0xff]
    %v50 = vld [vmem:[%s1 + $0x8] sm:$0xff]
    %v51 = vld [vmem:[%s1 + $0x10] sm:$0xff]
    %v52 = vld [vmem:[%s1 + $0x18] sm:$0xff]
    %v53 = vld [vmem:[%s1 + $0x20] sm:$0xff]
    %v54 = vld [vmem:[%s1 + $0x28] sm:$0xff]
    %v55 = vld [vmem:[%s2] sm:$0x7]
    %v57 = vlaneseq
    %v58 = vshrl.u32 %v57, 7
    %v59 = vsub.s32 0, %v58
    %v60 = vrot.slane %v55, %v59
    %v61 = vlaneseq
    %v62 = vshrl.u32 %v61, 7
    %v63 = vsub.s32 1, %v62
    %v64 = vrot.slane %v55, %v63
    %v65 = vlaneseq
    %v66 = vshrl.u32 %v65, 7
    %v67 = vsub.s32 2, %v66
    %v68 = vrot.slane %v55, %v67
    %vm72 = vcmask 130048
    %v74 = vsel %vm72, %v48, 0
    %76 = vmatprep.subr.mxu0 %v50
    %77 = vmatpush1.msra.mxu0 %v49
    %78 = vmatprep.subr.mxu0 %v53
    %79 = vmatpush1.msra.mxu0 %v52
    %80 = vmatprep.subr.mxu0 0.0
    %81 = vmatpush1.msra.mxu0 0.0
    %82 = vmatprep.subr.mxu0 0.0
    %83 = vmatpush1.msra.mxu0 0.0
    %84 = vmatprep.subr.mxu0 0.0
    %85 = vmatpush1.msra.mxu0 0.0
    %86 = vmatprep.subr.mxu0 0.0
    %87 = vmatpush1.msra.mxu0 0.0
    %88 = vmatprep.subr.mxu0 0.0
    %89 = vmatpush1.msra.mxu0 0.0
    %90 = vmatprep.subr.mxu0 0.0
    %91 = vmatpush1.msra.mxu0 0.0
    %92 = vmatprep.subr.mxu0 0.0
    %93 = vmatpush1.msra.mxu0 0.0
    %94 = vmatprep.subr.mxu0 0.0
    %95 = vmatpush1.msra.mxu0 0.0
    %96 = vmatprep.subr.mxu0 0.0
    %97 = vmatpush1.msra.mxu0 0.0
    %98 = vmatprep.subr.mxu0 0.0
    %99 = vmatpush1.msra.mxu0 0.0
    %100 = vmatprep.subr.mxu0 0.0
    %101 = vmatpush1.msra.mxu0 0.0
    %102 = vmatprep.subr.mxu0 0.0
    %103 = vmatpush1.msra.mxu0 0.0
    %104 = vmatprep.subr.mxu0 0.0
    %105 = vmatpush1.msra.mxu0 0.0
    %106 = vmatprep.subr.mxu0 0.0
    %107 = vmatpush1.msra.mxu0 0.0
    %108 = vmatprep.subr.mxu0 0.0
    %109 = vmatpush1.msra.mxu0 0.0
    %110 = vmatprep.subr.mxu0 0.0
    %111 = vmatpush1.msra.mxu0 0.0
    %112 = vmatprep.subr.mxu0 0.0
    %113 = vmatpush1.msra.mxu0 0.0
    %114 = vmatprep.subr.mxu0 0.0
    %115 = vmatpush1.msra.mxu0 0.0
    %116 = vmatprep.subr.mxu0 0.0
    %117 = vmatpush1.msra.mxu0 0.0
    %118 = vmatprep.subr.mxu0 0.0
    %119 = vmatpush1.msra.mxu0 0.0
    %120 = vmatprep.subr.mxu0 0.0
    %121 = vmatpush1.msra.mxu0 0.0
    %122 = vmatprep.subr.mxu0 0.0
    %123 = vmatpush1.msra.mxu0 0.0
    %124 = vmatprep.subr.mxu0 0.0
    %125 = vmatpush1.msra.mxu0 0.0
    %126 = vmatprep.subr.mxu0 0.0
    %127 = vmatpush1.msra.mxu0 0.0
    %128 = vmatprep.subr.mxu0 0.0
    %129 = vmatpush1.msra.mxu0 0.0
    %130 = vmatprep.subr.mxu0 0.0
    %131 = vmatpush1.msra.mxu0 0.0
    %132 = vmatprep.subr.mxu0 0.0
    %133 = vmatpush1.msra.mxu0 0.0
    %134 = vmatprep.subr.mxu0 0.0
    %135 = vmatpush1.msra.mxu0 0.0
    %136 = vmatprep.subr.mxu0 0.0
    %137 = vmatpush1.msra.mxu0 0.0
    %138 = vmatprep.subr.mxu0 0.0
    %139 = vmatpush1.msra.mxu0 0.0
    %140 = vmatprep.mubr.f32.mxu0 0.0
    %141 = vmatmul.mubr.f32.gmra.mrb[0].mxu0 %v74
    %v142 = vpop.f32.mrb[0].mxu0
    %v143 = vadd.f32 %v60, %v142
    %v144 = vpop.f32.mrb[0].mxu0
    %v145 = vadd.f32 %v64, %v144
    %146 = vdwg.mxu0
    %147 = vmatprep.subr.mxu0 0.0
    %148 = vmatpush1.msra.mxu0 %v51
    %149 = vmatprep.subr.mxu0 0.0
    %150 = vmatpush1.msra.mxu0 %v54
    %151 = vmatprep.subr.mxu0 0.0
    %152 = vmatpush1.msra.mxu0 0.0
    %153 = vmatprep.subr.mxu0 0.0
    %154 = vmatpush1.msra.mxu0 0.0
    %155 = vmatprep.subr.mxu0 0.0
    %156 = vmatpush1.msra.mxu0 0.0
    %157 = vmatprep.subr.mxu0 0.0
    %158 = vmatpush1.msra.mxu0 0.0
    %159 = vmatprep.subr.mxu0 0.0
    %160 = vmatpush1.msra.mxu0 0.0
    %161 = vmatprep.subr.mxu0 0.0
    %162 = vmatpush1.msra.mxu0 0.0
    %163 = vmatprep.subr.mxu0 0.0
    %164 = vmatpush1.msra.mxu0 0.0
    %165 = vmatprep.subr.mxu0 0.0
    %166 = vmatpush1.msra.mxu0 0.0
    %167 = vmatprep.subr.mxu0 0.0
    %168 = vmatpush1.msra.mxu0 0.0
    %169 = vmatprep.subr.mxu0 0.0
    %170 = vmatpush1.msra.mxu0 0.0
    %171 = vmatprep.subr.mxu0 0.0
    %172 = vmatpush1.msra.mxu0 0.0
    %173 = vmatprep.subr.mxu0 0.0
    %174 = vmatpush1.msra.mxu0 0.0
    %175 = vmatprep.subr.mxu0 0.0
    %176 = vmatpush1.msra.mxu0 0.0
    %177 = vmatprep.subr.mxu0 0.0
    %178 = vmatpush1.msra.mxu0 0.0
    %179 = vmatprep.subr.mxu0 0.0
    %180 = vmatpush1.msra.mxu0 0.0
    %181 = vmatprep.subr.mxu0 0.0
    %182 = vmatpush1.msra.mxu0 0.0
    %183 = vmatprep.subr.mxu0 0.0
    %184 = vmatpush1.msra.mxu0 0.0
    %185 = vmatprep.subr.mxu0 0.0
    %186 = vmatpush1.msra.mxu0 0.0
    %187 = vmatprep.subr.mxu0 0.0
    %188 = vmatpush1.msra.mxu0 0.0
    %189 = vmatprep.subr.mxu0 0.0
    %190 = vmatpush1.msra.mxu0 0.0
    %191 = vmatprep.subr.mxu0 0.0
    %192 = vmatpush1.msra.mxu0 0.0
    %193 = vmatprep.subr.mxu0 0.0
    %194 = vmatpush1.msra.mxu0 0.0
    %195 = vmatprep.subr.mxu0 0.0
    %196 = vmatpush1.msra.mxu0 0.0
    %197 = vmatprep.subr.mxu0 0.0
    %198 = vmatpush1.msra.mxu0 0.0
    %199 = vmatprep.subr.mxu0 0.0
    %200 = vmatpush1.msra.mxu0 0.0
    %201 = vmatprep.subr.mxu0 0.0
    %202 = vmatpush1.msra.mxu0 0.0
    %203 = vmatprep.subr.mxu0 0.0
    %204 = vmatpush1.msra.mxu0 0.0
    %205 = vmatprep.subr.mxu0 0.0
    %206 = vmatpush1.msra.mxu0 0.0
    %207 = vmatprep.subr.mxu0 0.0
    %208 = vmatpush1.msra.mxu0 0.0
    %209 = vmatprep.subr.mxu0 0.0
    %210 = vmatpush1.msra.mxu0 0.0
    %211 = vmatprep.mubr.f32.mxu0 0.0
    %212 = vmatmul.mubr.f32.gmra.mrb[0].mxu0 %v74
    %v213 = vpop.f32.mrb[0].mxu0
    %v214 = vadd.f32 %v68, %v213
    %v215 = vpop.f32.mrb[0].mxu0
    %216 = vdwg.mxu0
    %217 = vst [vmem:[%s5] sm:$0xff] %v143
    %218 = vst [vmem:[%s5 + $0x8] sm:$0xff] %v145
    %219 = vst [vmem:[%s5 + $0x10] sm:$0xff] %v214
    %v220 = vld [vmem:[#allocation2] sm:$0xff]
    %v221 = vld [vmem:[#allocation2 + $0x8] sm:$0xff]
    %v222 = vld [vmem:[#allocation4] sm:$0x1]
    %v224 = vlaneseq
    %v225 = vshrl.u32 %v224, 7
    %v226 = vsub.s32 0, %v225
    %v227 = vrot.slane %v222, %v226
    %229 = vmatprep.subr.mxu0 0.0
    %230 = vmatpush1.msra.mxu0 %v220
    %231 = vmatprep.subr.mxu0 0.0
    %232 = vmatpush1.msra.mxu0 %v221
    %233 = vmatprep.subr.mxu0 0.0
    %234 = vmatpush1.msra.mxu0 0.0
    %235 = vmatprep.subr.mxu0 0.0
    %236 = vmatpush1.msra.mxu0 0.0
    %237 = vmatprep.subr.mxu0 0.0
    %238 = vmatpush1.msra.mxu0 0.0
    %239 = vmatprep.subr.mxu0 0.0
    %240 = vmatpush1.msra.mxu0 0.0
    %241 = vmatprep.subr.mxu0 0.0
    %242 = vmatpush1.msra.mxu0 0.0
    %243 = vmatprep.subr.mxu0 0.0
    %244 = vmatpush1.msra.mxu0 0.0
    %245 = vmatprep.subr.mxu0 0.0
    %246 = vmatpush1.msra.mxu0 0.0
    %247 = vmatprep.subr.mxu0 0.0
    %248 = vmatpush1.msra.mxu0 0.0
    %249 = vmatprep.subr.mxu0 0.0
    %250 = vmatpush1.msra.mxu0 0.0
    %251 = vmatprep.subr.mxu0 0.0
    %252 = vmatpush1.msra.mxu0 0.0
    %253 = vmatprep.subr.mxu0 0.0
    %254 = vmatpush1.msra.mxu0 0.0
    %255 = vmatprep.subr.mxu0 0.0
    %256 = vmatpush1.msra.mxu0 0.0
    %257 = vmatprep.subr.mxu0 0.0
    %258 = vmatpush1.msra.mxu0 0.0
    %259 = vmatprep.subr.mxu0 0.0
    %260 = vmatpush1.msra.mxu0 0.0
    %261 = vmatprep.subr.mxu0 0.0
    %262 = vmatpush1.msra.mxu0 0.0
    %263 = vmatprep.subr.mxu0 0.0
    %264 = vmatpush1.msra.mxu0 0.0
    %265 = vmatprep.subr.mxu0 0.0
    %266 = vmatpush1.msra.mxu0 0.0
    %267 = vmatprep.subr.mxu0 0.0
    %268 = vmatpush1.msra.mxu0 0.0
    %269 = vmatprep.subr.mxu0 0.0
    %270 = vmatpush1.msra.mxu0 0.0
    %271 = vmatprep.subr.mxu0 0.0
    %272 = vmatpush1.msra.mxu0 0.0
    %273 = vmatprep.subr.mxu0 0.0
    %274 = vmatpush1.msra.mxu0 0.0
    %275 = vmatprep.subr.mxu0 0.0
    %276 = vmatpush1.msra.mxu0 0.0
    %277 = vmatprep.subr.mxu0 0.0
    %278 = vmatpush1.msra.mxu0 0.0
    %279 = vmatprep.subr.mxu0 0.0
    %280 = vmatpush1.msra.mxu0 0.0
    %281 = vmatprep.subr.mxu0 0.0
    %282 = vmatpush1.msra.mxu0 0.0
    %283 = vmatprep.subr.mxu0 0.0
    %284 = vmatpush1.msra.mxu0 0.0
    %285 = vmatprep.subr.mxu0 0.0
    %286 = vmatpush1.msra.mxu0 0.0
    %287 = vmatprep.subr.mxu0 0.0
    %288 = vmatpush1.msra.mxu0 0.0
    %289 = vmatprep.subr.mxu0 0.0
    %290 = vmatpush1.msra.mxu0 0.0
    %291 = vmatprep.subr.mxu0 0.0
    %292 = vmatpush1.msra.mxu0 0.0
    %293 = vmatprep.mubr.f32.mxu0 0.0
    %294 = vmatmul.mubr.f32.gmra.mrb[0].mxu0 %v74
    %v295 = vpop.f32.mrb[0].mxu0
    %v296 = vadd.f32 %v227, %v295
    %v297 = vpop.f32.mrb[0].mxu0
    %298 = vdwg.mxu0
    %299 = vst [vmem:[%s6] sm:$0xff] %v296
    // Predicated region
    $region30: #{generalized_bilinear_forward.2} parent=1 // pred_check
      _
    $region31: #{generalized_bilinear_forward.2} parent=1 // pred_check_branch
      %301 = sbr.rel (0) target = $region33
    $region32: #{generalized_bilinear_forward.2} parent=1 // pred_region
      _
    $region33: #{generalized_bilinear_forward.2} parent=1 // pred_fallthru
      _
    // Predicated region
    $region34: #{generalized_bilinear_forward.2} parent=1 // pred_check
      _
    $region35: #{generalized_bilinear_forward.2} parent=1 // pred_check_branch
      %303 = sbr.rel (0) target = $region37
    $region36: #{generalized_bilinear_forward.2} parent=1 // pred_region
      _
    $region37: #{generalized_bilinear_forward.2} parent=1 // pred_fallthru
      _
    // Predicated region
    $region38: #{generalized_bilinear_forward.2} parent=1 // pred_check
      _
    $region39: #{generalized_bilinear_forward.2} parent=1 // pred_check_branch
      %305 = sbr.rel (0) target = $region41
    $region40: #{generalized_bilinear_forward.2} parent=1 // pred_region
      _
    $region41: #{generalized_bilinear_forward.2} parent=1 // pred_fallthru
      _
    // Predicated region
    $region42: #{generalized_bilinear_forward.2} parent=1 // pred_check
      _
    $region43: #{generalized_bilinear_forward.2} parent=1 // pred_check_branch
      %307 = sbr.rel (0) target = $region45
    $region44: #{generalized_bilinear_forward.2} parent=1 // pred_region
      _
    $region45: #{generalized_bilinear_forward.2} parent=1 // pred_fallthru
      _
    %308 = vsyncpa [#allocation3], 1
    %309 = vsyncpa [#allocation5], 1

// kernel: generalized_bilinear_forward.3
$region0: #{generalized_bilinear_forward.3}
  #allocation0 [shape = 'u32[]', space=smem, size = 0x4, offset = 0x4, fixed_abs, tag = 'smem constant byte address 0x4 - core index']
  #allocation1 [shape = 'u32[144,128]{1,0:T(1,128)}', space=vmem, size = 0x12000, scoped, tag = 'internal scratch']
  %s0 = inlined_call_operand.vmem [shape: f32[8,64,3], index: 0, kind: input, shape index: {}]
  %s1 = inlined_call_operand.vmem [shape: f32[8,3,128], index: 1, kind: input, shape index: {}]
  %s2 = inlined_call_operand.vmem [shape: f32[8,1,128], index: 2, kind: input, shape index: {}]
  %s3 = inlined_call_operand.vmem [shape: f32[8,64,128], index: 3, kind: output, shape index: {}]
  %s4 = sld [smem:[#allocation0]]
  $region45: #{generalized_bilinear_forward.3} parent=0
    _
  %s6 = ssub.s32 1, %s4
  %s7 = scalar_select 0, %s6, %s4
  loop: start=0, step=1, limit=10
  $region2: #{generalized_bilinear_forward.3} parent=0 // loop_pre_header
    _
  $region3: #{generalized_bilinear_forward.3} parent=0 // loop_header
    %s9 = sphi 0, %s13
    %p10 = scmp.ge.s32.totalorder %s9, 10
    %s16 = sphi 0, %s28
    %s17 = sphi 0, %s24
    %s18 = sphi 0, %s16
    %s19 = sphi 0, %s17
    %s20 = sphi 0, %s18
    %s21 = sphi 0, %s19
    %s33 = sphi 0, %s35
    %s36 = sphi 0, %s33
    %s37 = sphi 0, %s36
    %s53 = sphi 0, %s37
    %s59 = sphi 0, %s61
    %s62 = sphi 0, %s59
    %s63 = sphi 0, %s62
    %s79 = sphi 0, %s63
    %s85 = sphi 0, %s87
    %s88 = sphi 0, %s85
    %s89 = sphi 0, %s88
    %s105 = sphi 0, %s89
    %s113 = sphi 0, %s115
    %s116 = sphi 0, %s113
    %s117 = sphi 0, %s116
    %s133 = sphi 0, %s117
  $region4: #{generalized_bilinear_forward.3} parent=0 // loop_header_branch
    %12 = sbr.rel (%p10) target = $region8
  $region5: #{generalized_bilinear_forward.3} parent=0 // loop_body
    %s14 = ssub.s32 %s9, 1
    %s15 = ssub.s32 %s9, 2
    %s22 = sadd.s32 1, %s17
    %p23 = scmp.ge.s32.totalorder %s22, 1
    %s24 = scalar_select %p23, 0, %s22
    %s25 = sadd.s32 1, %s16
    %s26 = scalar_select %p23, %s25, %s16
    %p27 = scmp.ge.s32.totalorder %s26, 8
    %s28 = scalar_select %p27, 0, %s26
    %s29 = ssub.s32 %s16, %s28
    %s30 = ssub.s32 %s17, %s24
    %s31 = sor.u32 %s29, %s30
    %p32 = scmp.eq.s32.totalorder %s31, 0
    %s34 = sadd.s32 %s33, 1
    %s35 = scalar_select %p32, %s33, %s34
    %p38 = pneg %p32
    %p39 = scmp.eq.s32.totalorder %s9, 7
    %p40 = por %p38, %p39
    %p41 = scmp.ne.s32.totalorder %s33, %s36
    %p42 = scmp.eq.s32.totalorder %s9, 0
    %p43 = por %p41, %p42
    %p44 = scmp.ne.s32.totalorder %s33, %s36
    %p45 = scmp.eq.s32.totalorder %s14, 7
    %p46 = por %p44, %p45
    %p47 = scmp.ne.s32.totalorder %s36, %s37
    %p48 = scmp.eq.s32.totalorder %s14, 0
    %p49 = por %p47, %p48
    %p50 = scmp.ne.s32.totalorder %s36, %s37
    %p51 = scmp.eq.s32.totalorder %s15, 7
    %p52 = por %p50, %p51
    %p54 = scmp.ne.s32.totalorder %s37, %s53
    %p55 = scmp.eq.s32.totalorder %s15, 0
    %p56 = por %p54, %p55
    %s57 = ssub.s32 %s16, %s28
    %p58 = scmp.eq.s32.totalorder %s57, 0
    %s60 = sadd.s32 %s59, 1
    %s61 = scalar_select %p58, %s59, %s60
    %p64 = pneg %p58
    %p65 = scmp.eq.s32.totalorder %s9, 7
    %p66 = por %p64, %p65
    %p67 = scmp.ne.s32.totalorder %s59, %s62
    %p68 = scmp.eq.s32.totalorder %s9, 0
    %p69 = por %p67, %p68
    %p70 = scmp.ne.s32.totalorder %s59, %s62
    %p71 = scmp.eq.s32.totalorder %s14, 7
    %p72 = por %p70, %p71
    %p73 = scmp.ne.s32.totalorder %s62, %s63
    %p74 = scmp.eq.s32.totalorder %s14, 0
    %p75 = por %p73, %p74
    %p76 = scmp.ne.s32.totalorder %s62, %s63
    %p77 = scmp.eq.s32.totalorder %s15, 7
    %p78 = por %p76, %p77
    %p80 = scmp.ne.s32.totalorder %s63, %s79
    %p81 = scmp.eq.s32.totalorder %s15, 0
    %p82 = por %p80, %p81
    %s83 = ssub.s32 %s16, %s28
    %p84 = scmp.eq.s32.totalorder %s83, 0
    %s86 = sadd.s32 %s85, 1
    %s87 = scalar_select %p84, %s85, %s86
    %p90 = pneg %p84
    %p91 = scmp.eq.s32.totalorder %s9, 7
    %p92 = por %p90, %p91
    %p93 = scmp.ne.s32.totalorder %s85, %s88
    %p94 = scmp.eq.s32.totalorder %s9, 0
    %p95 = por %p93, %p94
    %p96 = scmp.ne.s32.totalorder %s85, %s88
    %p97 = scmp.eq.s32.totalorder %s14, 7
    %p98 = por %p96, %p97
    %p99 = scmp.ne.s32.totalorder %s88, %s89
    %p100 = scmp.eq.s32.totalorder %s14, 0
    %p101 = por %p99, %p100
    %p102 = scmp.ne.s32.totalorder %s88, %s89
    %p103 = scmp.eq.s32.totalorder %s15, 7
    %p104 = por %p102, %p103
    %p106 = scmp.ne.s32.totalorder %s89, %s105
    %p107 = scmp.eq.s32.totalorder %s15, 0
    %p108 = por %p106, %p107
    %s109 = ssub.s32 %s16, %s28
    %s110 = ssub.s32 %s17, %s24
    %s111 = sor.u32 %s109, %s110
    %p112 = scmp.eq.s32.totalorder %s111, 0
    %s114 = sadd.s32 %s113, 1
    %s115 = scalar_select %p112, %s113, %s114
    %p118 = pneg %p112
    %p119 = scmp.eq.s32.totalorder %s9, 7
    %p120 = por %p118, %p119
    %p121 = scmp.ne.s32.totalorder %s113, %s116
    %p122 = scmp.eq.s32.totalorder %s9, 0
    %p123 = por %p121, %p122
    %p124 = scmp.ne.s32.totalorder %s113, %s116
    %p125 = scmp.eq.s32.totalorder %s14, 7
    %p126 = por %p124, %p125
    %p127 = scmp.ne.s32.totalorder %s116, %s117
    %p128 = scmp.eq.s32.totalorder %s14, 0
    %p129 = por %p127, %p128
    %p130 = scmp.ne.s32.totalorder %s116, %s117
    %p131 = scmp.eq.s32.totalorder %s15, 7
    %p132 = por %p130, %p131
    %p134 = scmp.ne.s32.totalorder %s117, %s133
    %p135 = scmp.eq.s32.totalorder %s15, 0
    %p136 = por %p134, %p135
    %p137 = scmp.le.s32.totalorder 1, %s9
    %p138 = scmp.lt.s32.totalorder %s9, 9
    %p139 = pnand %p137, %p138
    %p140 = pneg %p139
    // Predicated region
    $region9: #{generalized_bilinear_forward.3} parent=5 // pred_check
      _
    $region10: #{generalized_bilinear_forward.3} parent=5 // pred_check_branch
      %142 = sbr.rel (%p139) target = $region12
    $region11: #{generalized_bilinear_forward.3} parent=5 // pred_region
      %s143 = ssub.s32 %s9, 1
    $region12: #{generalized_bilinear_forward.3} parent=5 // pred_fallthru
      _
    %p144 = scmp.lt.s32.totalorder %s9, 8
    // Predicated region
    $region13: #{generalized_bilinear_forward.3} parent=5 // pred_check
      %p145 = pneg %p144
    $region14: #{generalized_bilinear_forward.3} parent=5 // pred_check_branch
      %147 = sbr.rel (%p145) target = $region16
    $region15: #{generalized_bilinear_forward.3} parent=5 // pred_region
      // Predicated region
      $region17: #{generalized_bilinear_forward.3} parent=15 // pred_check
        %p148 = pneg %p43
      $region18: #{generalized_bilinear_forward.3} parent=15 // pred_check_branch
        %150 = sbr.rel (%p148) target = $region20
      $region19: #{generalized_bilinear_forward.3} parent=15 // pred_region
        %s151 = smul.u32 8, %s17
        %p152 = scmp.lt.s32.totalorder %s16, 7
        %s153 = scalar_select %p152, %s16, 7
        %p154 = scmp.lt.s32.totalorder %s151, 7
        %s155 = scalar_select %p154, %s151, 7
        %s156 = smul.addr %s153, 8
        %s157 = sadd.s32 %s155, %s156
        %s158 = smul.addr %s157, 8
        %s159 = scalar_lea.vmem %s0, %s158
        %s160 = smul.u32 8, %s17
      $region20: #{generalized_bilinear_forward.3} parent=15 // pred_fallthru
        _
      // Predicated region
      $region21: #{generalized_bilinear_forward.3} parent=15 // pred_check
        %p161 = pneg %p69
      $region22: #{generalized_bilinear_forward.3} parent=15 // pred_check_branch
        %163 = sbr.rel (%p161) target = $region24
      $region23: #{generalized_bilinear_forward.3} parent=15 // pred_region
        %p164 = scmp.lt.s32.totalorder %s16, 7
        %s165 = scalar_select %p164, %s16, 7
        %s166 = smul.addr %s165, 4
        %s167 = scalar_lea.vmem %s1, %s166
      $region24: #{generalized_bilinear_forward.3} parent=15 // pred_fallthru
        _
      // Predicated region
      $region25: #{generalized_bilinear_forward.3} parent=15 // pred_check
        %p168 = pneg %p95
      $region26: #{generalized_bilinear_forward.3} parent=15 // pred_check_branch
        %170 = sbr.rel (%p168) target = $region28
      $region27: #{generalized_bilinear_forward.3} parent=15 // pred_region
        %p171 = scmp.lt.s32.totalorder %s16, 7
        %s172 = scalar_select %p171, %s16, 7
        %s173 = scalar_lea.vmem %s2, %s172
      $region28: #{generalized_bilinear_forward.3} parent=15 // pred_fallthru
        _
    $region16: #{generalized_bilinear_forward.3} parent=5 // pred_fallthru
      _
    %p174 = scmp.le.s32.totalorder 1, %s9
    %p175 = scmp.lt.s32.totalorder %s9, 9
    %p176 = pnand %p174, %p175
    %p177 = pneg %p176
    // Predicated region
    $region29: #{generalized_bilinear_forward.3} parent=5 // pred_check
      _
    $region30: #{generalized_bilinear_forward.3} parent=5 // pred_check_branch
      %179 = sbr.rel (%p176) target = $region32
    $region31: #{generalized_bilinear_forward.3} parent=5 // pred_region
      %s180 = ssub.s32 %s9, 1
      %s181 = smul.u32 8, %s19
      %p182 = scmp.lt.s32.totalorder %s18, 7
      %s183 = scalar_select %p182, %s18, 7
      %p184 = scmp.lt.s32.totalorder %s181, 7
      %s185 = scalar_select %p184, %s181, 7
      %s186 = smul.addr %s183, 8
      %s187 = sadd.s32 %s185, %s186
      %s188 = smul.addr %s187, 8
      %s189 = scalar_lea.vmem %s0, %s188
      %p190 = pneg %p49
      %p191 = pneg %p46
      %p192 = scmp.lt.s32.totalorder %s18, 7
      %s193 = scalar_select %p192, %s18, 7
      %s194 = smul.addr %s193, 4
      %s195 = scalar_lea.vmem %s1, %s194
      %p196 = pneg %p75
      %p197 = pneg %p72
      %p198 = scmp.lt.s32.totalorder %s18, 7
      %s199 = scalar_select %p198, %s18, 7
      %s200 = scalar_lea.vmem %s2, %s199
      %p201 = pneg %p101
      %p202 = pneg %p98
      %p203 = pneg %p129
      %p204 = pneg %p126
      %s205 = smul.u32 8, %s19
      %p206 = scmp.lt.s32.totalorder %s18, 7
      %s207 = scalar_select %p206, %s18, 7
      %p208 = scmp.lt.s32.totalorder %s205, 7
      %s209 = scalar_select %p208, %s205, 7
      %s210 = smul.addr %s207, 8
      %s211 = sadd.s32 %s209, %s210
      %s212 = smul.addr %s211, 8
      %s213 = scalar_lea.vmem %s3, %s212
      %s214 = smul.u32 8, %s19
      %p215 = scmp.lt.s32.totalorder %s18, 7
      %s216 = scalar_select %p215, %s18, 7
      %p217 = scmp.lt.s32.totalorder %s214, 7
      %s218 = scalar_select %p217, %s214, 7
      %s219 = smul.addr %s216, 8
      %s220 = sadd.s32 %s218, %s219
      %s221 = smul.addr %s220, 8
      %s222 = scalar_lea.vmem %s0, %s221
      %s223 = smul.u32 8, %s19
      %p224 = scmp.lt.s32.totalorder %s18, 7
      %s225 = scalar_select %p224, %s18, 7
      %s226 = smul.addr %s225, 4
      %s227 = scalar_lea.vmem %s1, %s226
      %p228 = scmp.lt.s32.totalorder %s18, 7
      %s229 = scalar_select %p228, %s18, 7
      %s230 = scalar_lea.vmem %s2, %s229
      %s231 = smul.u32 8, %s19
      %p232 = scmp.lt.s32.totalorder %s18, 7
      %s233 = scalar_select %p232, %s18, 7
      %p234 = scmp.lt.s32.totalorder %s231, 7
      %s235 = scalar_select %p234, %s231, 7
      %s236 = smul.addr %s233, 8
      %s237 = sadd.s32 %s235, %s236
      %s238 = smul.addr %s237, 8
      %s239 = scalar_lea.vmem %s3, %s238
      %s240 = smul.u32 8, %s19
      %v241 = vld [vmem:[%s222] sm:$0xff]
      %v242 = vld [vmem:[%s222 + $0x8] sm:$0xff]
      %v243 = vld [vmem:[%s222 + $0x10] sm:$0xff]
      %v244 = vld [vmem:[%s222 + $0x18] sm:$0xff]
      %v245 = vld [vmem:[%s222 + $0x20] sm:$0xff]
      %v246 = vld [vmem:[%s222 + $0x28] sm:$0xff]
      %v247 = vld [vmem:[%s222 + $0x30] sm:$0xff]
      %v248 = vld [vmem:[%s222 + $0x38] sm:$0xff]
      %v249 = vld [vmem:[%s227] sm:$0x7]
      %v250 = vld [vmem:[%s230] sm:$0x1]
      %v252 = vlaneseq
      %v253 = vshrl.u32 %v252, 7
      %v254 = vsub.s32 0, %v253
      %v255 = vrot.slane %v250, %v254
      %vm257 = vcmask 23552
      %v259 = vsel %vm257, %v241, 0
      %v262 = vsel %vm257, %v242, 0
      %v265 = vsel %vm257, %v243, 0
      %v268 = vsel %vm257, %v244, 0
      %v271 = vsel %vm257, %v245, 0
      %v274 = vsel %vm257, %v246, 0
      %v277 = vsel %vm257, %v247, 0
      %v280 = vsel %vm257, %v248, 0
      %vm282 = vcmask 1042432
      %v284 = vsel %vm282, %v249, 0
      %286 = vmatprep.subr.mxu0 0.0
      %287 = vmatpush1.msra.mxu0 %v284
      %288 = vmatprep.subr.mxu0 0.0
      %289 = vmatpush1.msra.mxu0 0.0
      %290 = vmatprep.subr.mxu0 0.0
      %291 = vmatpush1.msra.mxu0 0.0
      %292 = vmatprep.subr.mxu0 0.0
      %293 = vmatpush1.msra.mxu0 0.0
      %294 = vmatprep.subr.mxu0 0.0
      %295 = vmatpush1.msra.mxu0 0.0
      %296 = vmatprep.subr.mxu0 0.0
      %297 = vmatpush1.msra.mxu0 0.0
      %298 = vmatprep.subr.mxu0 0.0
      %299 = vmatpush1.msra.mxu0 0.0
      %300 = vmatprep.subr.mxu0 0.0
      %301 = vmatpush1.msra.mxu0 0.0
      %302 = vmatprep.subr.mxu0 0.0
      %303 = vmatpush1.msra.mxu0 0.0
      %304 = vmatprep.subr.mxu0 0.0
      %305 = vmatpush1.msra.mxu0 0.0
      %306 = vmatprep.subr.mxu0 0.0
      %307 = vmatpush1.msra.mxu0 0.0
      %308 = vmatprep.subr.mxu0 0.0
      %309 = vmatpush1.msra.mxu0 0.0
      %310 = vmatprep.subr.mxu0 0.0
      %311 = vmatpush1.msra.mxu0 0.0
      %312 = vmatprep.subr.mxu0 0.0
      %313 = vmatpush1.msra.mxu0 0.0
      %314 = vmatprep.subr.mxu0 0.0
      %315 = vmatpush1.msra.mxu0 0.0
      %316 = vmatprep.subr.mxu0 0.0
      %317 = vmatpush1.msra.mxu0 0.0
      %318 = vmatprep.subr.mxu0 0.0
      %319 = vmatpush1.msra.mxu0 0.0
      %320 = vmatprep.subr.mxu0 0.0
      %321 = vmatpush1.msra.mxu0 0.0
      %322 = vmatprep.subr.mxu0 0.0
      %323 = vmatpush1.msra.mxu0 0.0
      %324 = vmatprep.subr.mxu0 0.0
      %325 = vmatpush1.msra.mxu0 0.0
      %326 = vmatprep.subr.mxu0 0.0
      %327 = vmatpush1.msra.mxu0 0.0
      %328 = vmatprep.subr.mxu0 0.0
      %329 = vmatpush1.msra.mxu0 0.0
      %330 = vmatprep.subr.mxu0 0.0
      %331 = vmatpush1.msra.mxu0 0.0
      %332 = vmatprep.subr.mxu0 0.0
      %333 = vmatpush1.msra.mxu0 0.0
      %334 = vmatprep.subr.mxu0 0.0
      %335 = vmatpush1.msra.mxu0 0.0
      %336 = vmatprep.subr.mxu0 0.0
      %337 = vmatpush1.msra.mxu0 0.0
      %338 = vmatprep.subr.mxu0 0.0
      %339 = vmatpush1.msra.mxu0 0.0
      %340 = vmatprep.subr.mxu0 0.0
      %341 = vmatpush1.msra.mxu0 0.0
      %342 = vmatprep.subr.mxu0 0.0
      %343 = vmatpush1.msra.mxu0 0.0
      %344 = vmatprep.subr.mxu0 0.0
      %345 = vmatpush1.msra.mxu0 0.0
      %346 = vmatprep.subr.mxu0 0.0
      %347 = vmatpush1.msra.mxu0 0.0
      %348 = vmatprep.subr.mxu0 0.0
      %349 = vmatpush1.msra.mxu0 0.0
      %350 = vmatprep.mubr.f32.mxu0 0.0
      %351 = vmatmul.mubr.f32.gmra.mrb[0].mxu0 %v259
      %v352 = vpop.f32.mrb[0].mxu0
      %v353 = vadd.f32 %v255, %v352
      %v354 = vpop.f32.mrb[0].mxu0
      %355 = vmatprep.mubr.f32.mxu0 0.0
      %356 = vmatmul.mubr.f32.gmra.mrb[0].mxu0 %v262
      %v357 = vpop.f32.mrb[0].mxu0
      %v358 = vadd.f32 %v255, %v357
      %v359 = vpop.f32.mrb[0].mxu0
      %360 = vmatprep.mubr.f32.mxu0 0.0
      %361 = vmatmul.mubr.f32.gmra.mrb[0].mxu0 %v265
      %v362 = vpop.f32.mrb[0].mxu0
      %v363 = vadd.f32 %v255, %v362
      %v364 = vpop.f32.mrb[0].mxu0
      %365 = vmatprep.mubr.f32.mxu0 0.0
      %366 = vmatmul.mubr.f32.gmra.mrb[0].mxu0 %v268
      %v367 = vpop.f32.mrb[0].mxu0
      %v368 = vadd.f32 %v255, %v367
      %v369 = vpop.f32.mrb[0].mxu0
      %370 = vmatprep.mubr.f32.mxu0 0.0
      %371 = vmatmul.mubr.f32.gmra.mrb[0].mxu0 %v271
      %v372 = vpop.f32.mrb[0].mxu0
      %v373 = vadd.f32 %v255, %v372
      %v374 = vpop.f32.mrb[0].mxu0
      %375 = vmatprep.mubr.f32.mxu0 0.0
      %376 = vmatmul.mubr.f32.gmra.mrb[0].mxu0 %v274
      %v377 = vpop.f32.mrb[0].mxu0
      %v378 = vadd.f32 %v255, %v377
      %v379 = vpop.f32.mrb[0].mxu0
      %380 = vmatprep.mubr.f32.mxu0 0.0
      %381 = vmatmul.mubr.f32.gmra.mrb[0].mxu0 %v277
      %v382 = vpop.f32.mrb[0].mxu0
      %v383 = vadd.f32 %v255, %v382
      %v384 = vpop.f32.mrb[0].mxu0
      %385 = vmatprep.mubr.f32.mxu0 0.0
      %386 = vmatmul.mubr.f32.gmra.mrb[0].mxu0 %v280
      %v387 = vpop.f32.mrb[0].mxu0
      %v388 = vadd.f32 %v255, %v387
      %v389 = vpop.f32.mrb[0].mxu0
      %390 = vdwg.mxu0
      %391 = vst [vmem:[%s239] sm:$0xff] %v353
      %392 = vst [vmem:[%s239 + $0x8] sm:$0xff] %v358
      %393 = vst [vmem:[%s239 + $0x10] sm:$0xff] %v363
      %394 = vst [vmem:[%s239 + $0x18] sm:$0xff] %v368
      %395 = vst [vmem:[%s239 + $0x20] sm:$0xff] %v373
      %396 = vst [vmem:[%s239 + $0x28] sm:$0xff] %v378
      %397 = vst [vmem:[%s239 + $0x30] sm:$0xff] %v383
      %398 = vst [vmem:[%s239 + $0x38] sm:$0xff] %v388
      %s399 = smul.u32 8, %s19
      %p400 = scmp.lt.s32.totalorder %s18, 7
      %s401 = scalar_select %p400, %s18, 7
      %p402 = scmp.lt.s32.totalorder %s399, 7
      %s403 = scalar_select %p402, %s399, 7
      %s404 = smul.addr %s401, 8
      %s405 = sadd.s32 %s403, %s404
      %s406 = smul.addr %s405, 8
      %s407 = scalar_lea.vmem %s3, %s406
      // Predicated region
      $region33: #{generalized_bilinear_forward.3} parent=31 // pred_check
        %p408 = pneg %p126
      $region34: #{generalized_bilinear_forward.3} parent=31 // pred_check_branch
        %410 = sbr.rel (%p408) target = $region36
      $region35: #{generalized_bilinear_forward.3} parent=31 // pred_region
        %s411 = smul.u32 8, %s19
      $region36: #{generalized_bilinear_forward.3} parent=31 // pred_fallthru
        _
    $region32: #{generalized_bilinear_forward.3} parent=5 // pred_fallthru
      _
    %p412 = scmp.le.s32.totalorder 2, %s9
    // Predicated region
    $region37: #{generalized_bilinear_forward.3} parent=5 // pred_check
      %p413 = pneg %p412
    $region38: #{generalized_bilinear_forward.3} parent=5 // pred_check_branch
      %415 = sbr.rel (%p413) target = $region40
    $region39: #{generalized_bilinear_forward.3} parent=5 // pred_region
      %s416 = ssub.s32 %s9, 2
      // Predicated region
      $region41: #{generalized_bilinear_forward.3} parent=39 // pred_check
        %p417 = pneg %p132
      $region42: #{generalized_bilinear_forward.3} parent=39 // pred_check_branch
        %419 = sbr.rel (%p417) target = $region44
      $region43: #{generalized_bilinear_forward.3} parent=39 // pred_region
        %s420 = smul.u32 8, %s21
        %p421 = scmp.lt.s32.totalorder %s20, 7
        %s422 = scalar_select %p421, %s20, 7
        %p423 = scmp.lt.s32.totalorder %s420, 7
        %s424 = scalar_select %p423, %s420, 7
        %s425 = smul.addr %s422, 8
        %s426 = sadd.s32 %s424, %s425
        %s427 = smul.addr %s426, 8
        %s428 = scalar_lea.vmem %s3, %s427
      $region44: #{generalized_bilinear_forward.3} parent=39 // pred_fallthru
        _
    $region40: #{generalized_bilinear_forward.3} parent=5 // pred_fallthru
      _
  $region6: #{generalized_bilinear_forward.3} parent=0 // loop_footer
    %s13 = sadd.s32 1, %s9
  $region7: #{generalized_bilinear_forward.3} parent=0 // loop_footer_branch
    %8 = sbr.rel target = $region3
  $region8: #{generalized_bilinear_forward.3} parent=0 // loop_exit
    _

</llo_original>
